<compile_context>
chip_gen: v6e
topology: v6e:2x2x1
jax: 0.10.0
libtpu: 0.0.40
codegen_flags: <defaults>
</compile_context>

<pallas_src>
import functools

import jax
import jax.numpy as jnp
from jax import lax
from jax.experimental import pallas as pl
from jax.experimental.pallas import tpu as pltpu


# ----------------------------------------------------------------------------
# kernel: one (batch-row, time-tile) grid step
#   out[co, p] = bias[co] + sum_{j, ci} w[co, ci, j] * window[ci, p + j*d]
# where window = [main tile | right halo] of the HBM-side left-padded input.
# ----------------------------------------------------------------------------
def _same_pad_conv_kernel(k, dilation, x_ref, xh_ref, w_ref, b_ref, o_ref,
                          rhs_ref):
    # x_ref  : (Cin,  T_tile)   main input tile
    # xh_ref : (Cin,  H_pad)    right halo (first columns of the next tile)
    # w_ref  : (Cout, k*Cin)    taps stacked along the contraction axis
    # b_ref  : (Cout, 1)        f32 bias
    # o_ref  : (Cout, T_tile)
    # rhs_ref: (k*Cin, T_tile)  im2col scratch (compute dtype)
    cin, t_tile = x_ref.shape

    # Build im2col directly in scratch: band j = input shifted by j*dilation,
    # stitched from (main, halo). Static slices only.
    rhs_ref[0:cin, :] = x_ref[...]
    for j in range(1, k):
        off = j * dilation
        lo = j * cin
        if off < t_tile:
            rhs_ref[lo:lo + cin, 0:t_tile - off] = x_ref[:, off:]
        rhs_ref[lo:lo + cin, t_tile - off:t_tile] = xh_ref[:, 0:off]

    acc = jnp.dot(w_ref[...], rhs_ref[...],
                  preferred_element_type=jnp.float32)          # (Cout, T_tile)
    o_ref[...] = (acc + b_ref[...]).astype(o_ref.dtype)


def _vmem_limit_bytes():
    try:
        cap = int(pltpu.get_tpu_info().vmem_capacity_bytes)
    except Exception:
        cap = 64 * 1024 * 1024        # conservative: v7x physical VMEM
    return max(16 * 1024 * 1024, int(0.70 * cap))


# ----------------------------------------------------------------------------
# wrapper: PyTorch layouts in / out
#   x: (B, Cin, T), w: (Cout, Cin, k) [torch Conv1d weight], b: (Cout,)
#   returns (B, Cout, T)  (== SamePadConv.forward, incl. even-rf trailing trim)
# ----------------------------------------------------------------------------
def same_pad_conv(x, w, b, *, dilation=1, groups=1,
                  compute_dtype=jnp.bfloat16, t_tile=512):
    if groups != 1:
        # TODO(synk): grouped Conv1d (groups > 1) not implemented in this kernel.
        raise NotImplementedError("only groups=1 is supported")

    B, Cin, T = x.shape
    Cout, Cin_w, k = w.shape
    assert Cin_w == Cin
    out_dtype = x.dtype
    cdt = jnp.dtype(compute_dtype if compute_dtype is not None else x.dtype)

    rf = (k - 1) * dilation + 1
    pad = rf // 2          # left 'same' pad; trailing trim for even rf is implicit
    halo = rf - 1          # extra right-side columns each tile needs

    # ---- tile sizing: lane-dense (multiple of 128), halo-block aligned -----
    h_pad = max(128, 128 * pl.cdiv(halo, 128))
    t_cap = h_pad * pl.cdiv(T, h_pad)
    tt = min(int(t_tile), t_cap)
    tt = max(h_pad, (tt // h_pad) * h_pad)

    vmem_limit = _vmem_limit_bytes()
    csize = cdt.itemsize
    osize = jnp.dtype(out_dtype).itemsize

    def tile_bytes(tt_):
        return (2 * Cin * tt_ * csize            # double-buffered main x tile
                + 2 * Cin * h_pad * csize        # double-buffered halo tile
                + 2 * Cout * tt_ * osize         # double-buffered output tile
                + k * Cin * tt_ * csize          # im2col scratch
                + Cout * tt_ * 4                 # f32 accumulator
                + Cout * k * Cin * csize + Cout * 4)   # resident weights + bias

    while tt > h_pad and tile_bytes(tt) > vmem_limit // 2:
        tt -= h_pad

    nT = pl.cdiv(T, tt)
    L = nT * tt + h_pad                  # padded input length
    bpt = tt // h_pad                    # halo blocks per main tile

    # ---- HBM-side prep: one cast to compute dtype + one padded copy that
    # provides the left 'same' halo, ragged-tail zeros and right halo. -------
    x_pad = jnp.pad(x.astype(cdt), ((0, 0), (0, 0), (pad, L - pad - T)))
    # wmat[co, j*Cin + ci] = w[co, ci, j]
    wmat = jnp.transpose(w, (0, 2, 1)).reshape(Cout, k * Cin).astype(cdt)
    bcol = b.reshape(Cout, 1).astype(jnp.float32)

    kernel = functools.partial(_same_pad_conv_kernel, k, dilation)

    cost = pl.CostEstimate(
        flops=2 * B * Cout * k * Cin * T,
        transcendentals=0,
        bytes_accessed=(B * Cin * T * csize + Cout * k * Cin * csize
                        + Cout * 4 + B * Cout * T * osize),
    )

    out = pl.pallas_call(
        kernel,
        out_shape=jax.ShapeDtypeStruct((B, Cout, nT * tt), out_dtype),
        grid=(B, nT),
        in_specs=[
            pl.BlockSpec((None, Cin, tt), lambda bi, ti: (bi, 0, ti)),
            pl.BlockSpec((None, Cin, h_pad),
                         lambda bi, ti: (bi, 0, (ti + 1) * bpt)),
            pl.BlockSpec((Cout, k * Cin), lambda bi, ti: (0, 0)),
            pl.BlockSpec((Cout, 1), lambda bi, ti: (0, 0)),
        ],
        out_specs=pl.BlockSpec((None, Cout, tt), lambda bi, ti: (bi, 0, ti)),
        scratch_shapes=[pltpu.VMEM((k * Cin, tt), cdt)],
        compiler_params=pltpu.CompilerParams(
            dimension_semantics=("parallel", "parallel"),
            vmem_limit_bytes=vmem_limit,
        ),
        cost_estimate=cost,
    )(x_pad, x_pad, wmat, bcol)

    return out[:, :, :T] if nT * tt != T else out


# ----------------------------------------------------------------------------
# pure-JAX reference (mirrors torch SamePadConv exactly)
# ----------------------------------------------------------------------------
def same_pad_conv_ref(x, w, b, *, dilation=1):
    k = w.shape[-1]
    rf = (k - 1) * dilation + 1
    pad = rf // 2
    out = lax.conv_general_dilated(
        x, w, window_strides=(1,), padding=[(pad, pad)],
        rhs_dilation=(dilation,),
        dimension_numbers=("NCH", "OIH", "NCH"),
        precision=lax.Precision.HIGHEST)
    out = out + b[None, :, None]
    if rf % 2 == 0:
        out = out[:, :, :-1]
    return out


if __name__ == "__main__":
    key = jax.random.PRNGKey(0)
    kx, kw1, kb1, kw2, kb2, kx4 = jax.random.split(key, 6)

    B, Cin, Cout, T = 2, 32, 64, 16
    x = jax.random.normal(kx, (B, Cin, T), dtype=jnp.float32)

    w1 = (0.05 * jax.random.normal(kw1, (Cout, Cin, 3))).astype(jnp.float32)
    b1 = (0.05 * jax.random.normal(kb1, (Cout,))).astype(jnp.float32)
    w2 = (0.05 * jax.random.normal(kw2, (Cout, Cin, 4))).astype(jnp.float32)
    b2 = (0.05 * jax.random.normal(kb2, (Cout,))).astype(jnp.float32)

    # --- 1) odd receptive field (k=3, dilation=2 -> rf=5), f32 compute ------
    out1 = jax.block_until_ready(
        same_pad_conv(x, w1, b1, dilation=2, compute_dtype=jnp.float32))
    ref1 = same_pad_conv_ref(x, w1, b1, dilation=2)
    assert out1.shape == (B, Cout, T)
    assert float(jnp.max(jnp.abs(out1 - ref1))) < 2e-2

    # --- 2) even receptive field (k=4 -> rf=4, trailing trim), f32 compute --
    out2 = jax.block_until_ready(
        same_pad_conv(x, w2, b2, dilation=1, compute_dtype=jnp.float32))
    ref2 = same_pad_conv_ref(x, w2, b2, dilation=1)
    assert out2.shape == (B, Cout, T)
    assert float(jnp.max(jnp.abs(out2 - ref2))) < 2e-2

    # --- 3) default bf16 operands (f32 accumulation), looser tolerance ------
    out3 = jax.block_until_ready(same_pad_conv(x, w1, b1, dilation=2))
    assert out3.shape == (B, Cout, T)
    assert float(jnp.max(jnp.abs(out3 - ref1))) < 6e-2

    # --- 4) multi-tile T (halo across tile boundaries + ragged tail) --------
    T4 = 300
    x4 = jax.random.normal(kx4, (B, Cin, T4), dtype=jnp.float32)
    out4 = jax.block_until_ready(
        same_pad_conv(x4, w1, b1, dilation=2, compute_dtype=jnp.float32,
                      t_tile=128))
    ref4 = same_pad_conv_ref(x4, w1, b1, dilation=2)
    assert out4.shape == (B, Cout, T4)
    assert float(jnp.max(jnp.abs(out4 - ref4))) < 2e-2

    print("KERNEL_OK")
</pallas_src>

<mosaic_0001>
module attributes {stable_mosaic.version = 11 : i64} {
  func.func @_same_pad_conv_kernel(%arg0: i32, %arg1: i32, %arg2: memref<1x32x128xf32, #tpu.memory_space<vmem>>, %arg3: memref<1x32x128xf32, #tpu.memory_space<vmem>>, %arg4: memref<64x96xf32, #tpu.memory_space<vmem>>, %arg5: memref<64x1xf32, #tpu.memory_space<vmem>>, %arg6: memref<1x64x128xf32, #tpu.memory_space<vmem>>, %arg7: memref<96x128xf32, #tpu.memory_space<vmem>>) attributes {dimension_semantics = [#tpu.dimension_semantics<parallel>, #tpu.dimension_semantics<parallel>], iteration_bounds = array<i64: 2, 1>, scalar_prefetch = 0 : i64, scratch_operands = 1 : i64, tpu.core_type = #tpu.core_type<tc>, window_params = [{transform_indices = @transform_0, window_bounds = array<i64: 1, 32, 128>}, {transform_indices = @transform_1, window_bounds = array<i64: 1, 32, 128>}, {pipeline_mode = #tpu.pipeline_mode<synchronous>, transform_indices = @transform_2, window_bounds = array<i64: 64, 96>}, {pipeline_mode = #tpu.pipeline_mode<synchronous>, transform_indices = @transform_3, window_bounds = array<i64: 64, 1>}, {transform_indices = @transform_4, window_bounds = array<i64: 1, 64, 128>}]} {
    %c0 = arith.constant 0 : index
    %c0_0 = arith.constant 0 : index
    %c0_1 = arith.constant 0 : index
    %0 = vector.load %arg2[%c0, %c0_0, %c0_1] : memref<1x32x128xf32, #tpu.memory_space<vmem>>, vector<1x32x128xf32>
    %1 = vector.shape_cast %0 : vector<1x32x128xf32> to vector<32x128xf32>
    %c0_2 = arith.constant 0 : index
    %c0_3 = arith.constant 0 : index
    %2 = vector.load %arg7[%c0_2, %c0_3] : memref<96x128xf32, #tpu.memory_space<vmem>>, vector<32x128xf32>
    tpu.vector_store %arg7[%c0_2, %c0_3], %1 {strides = array<i32>} : memref<96x128xf32, #tpu.memory_space<vmem>>, vector<32x128xf32>,
    %c0_4 = arith.constant 0 : index
    %c0_5 = arith.constant 0 : index
    %c2 = arith.constant 2 : index
    %3 = vector.load %arg2[%c0_4, %c0_5, %c2] : memref<1x32x128xf32, #tpu.memory_space<vmem>>, vector<1x32x126xf32>
    %4 = vector.shape_cast %3 : vector<1x32x126xf32> to vector<32x126xf32>
    %c32 = arith.constant 32 : index
    %c0_6 = arith.constant 0 : index
    %5 = vector.load %arg7[%c32, %c0_6] : memref<96x128xf32, #tpu.memory_space<vmem>>, vector<32x126xf32>
    tpu.vector_store %arg7[%c32, %c0_6], %4 {strides = array<i32>} : memref<96x128xf32, #tpu.memory_space<vmem>>, vector<32x126xf32>,
    %c0_7 = arith.constant 0 : index
    %c0_8 = arith.constant 0 : index
    %c0_9 = arith.constant 0 : index
    %6 = vector.load %arg3[%c0_7, %c0_8, %c0_9] : memref<1x32x128xf32, #tpu.memory_space<vmem>>, vector<1x32x2xf32>
    %7 = vector.shape_cast %6 : vector<1x32x2xf32> to vector<32x2xf32>
    %c32_10 = arith.constant 32 : index
    %c126 = arith.constant 126 : index
    %8 = vector.load %arg7[%c32_10, %c126] : memref<96x128xf32, #tpu.memory_space<vmem>>, vector<32x2xf32>
    tpu.vector_store %arg7[%c32_10, %c126], %7 {strides = array<i32>} : memref<96x128xf32, #tpu.memory_space<vmem>>, vector<32x2xf32>,
    %c0_11 = arith.constant 0 : index
    %c0_12 = arith.constant 0 : index
    %c4 = arith.constant 4 : index
    %9 = vector.load %arg2[%c0_11, %c0_12, %c4] : memref<1x32x128xf32, #tpu.memory_space<vmem>>, vector<1x32x124xf32>
    %10 = vector.shape_cast %9 : vector<1x32x124xf32> to vector<32x124xf32>
    %c64 = arith.constant 64 : index
    %c0_13 = arith.constant 0 : index
    %11 = vector.load %arg7[%c64, %c0_13] : memref<96x128xf32, #tpu.memory_space<vmem>>, vector<32x124xf32>
    tpu.vector_store %arg7[%c64, %c0_13], %10 {strides = array<i32>} : memref<96x128xf32, #tpu.memory_space<vmem>>, vector<32x124xf32>,
    %c0_14 = arith.constant 0 : index
    %c0_15 = arith.constant 0 : index
    %c0_16 = arith.constant 0 : index
    %12 = vector.load %arg3[%c0_14, %c0_15, %c0_16] : memref<1x32x128xf32, #tpu.memory_space<vmem>>, vector<1x32x4xf32>
    %13 = vector.shape_cast %12 : vector<1x32x4xf32> to vector<32x4xf32>
    %c64_17 = arith.constant 64 : index
    %c124 = arith.constant 124 : index
    %14 = vector.load %arg7[%c64_17, %c124] : memref<96x128xf32, #tpu.memory_space<vmem>>, vector<32x4xf32>
    tpu.vector_store %arg7[%c64_17, %c124], %13 {strides = array<i32>} : memref<96x128xf32, #tpu.memory_space<vmem>>, vector<32x4xf32>,
    %c0_18 = arith.constant 0 : index
    %c0_19 = arith.constant 0 : index
    %15 = vector.load %arg4[%c0_18, %c0_19] : memref<64x96xf32, #tpu.memory_space<vmem>>, vector<64x96xf32>
    %c0_20 = arith.constant 0 : index
    %c0_21 = arith.constant 0 : index
    %16 = vector.load %arg7[%c0_20, %c0_21] : memref<96x128xf32, #tpu.memory_space<vmem>>, vector<96x128xf32>
    %cst = arith.constant dense<0.000000e+00> : vector<64x128xf32>
    %17 = tpu.matmul %15, %16, %cst {dimension_numbers = #tpu.dot_dimension_numbers<[1], [0], [0], [1], [0, 0, 1, 1], [], []>} : vector<64x96xf32>, vector<96x128xf32>, vector<64x128xf32> -> vector<64x128xf32>
    %c0_22 = arith.constant 0 : index
    %c0_23 = arith.constant 0 : index
    %18 = vector.load %arg5[%c0_22, %c0_23] : memref<64x1xf32, #tpu.memory_space<vmem>>, vector<64x1xf32>
    %19 = vector.broadcast %18 : vector<64x1xf32> to vector<64x128xf32>
    %20 = arith.addf %17, %19 : vector<64x128xf32>
    %c0_24 = arith.constant 0 : index
    %c0_25 = arith.constant 0 : index
    %c0_26 = arith.constant 0 : index
    %21 = vector.load %arg6[%c0_24, %c0_25, %c0_26] : memref<1x64x128xf32, #tpu.memory_space<vmem>>, vector<1x64x128xf32>
    %22 = vector.shape_cast %21 : vector<1x64x128xf32> to vector<64x128xf32>
    %23 = vector.shape_cast %20 : vector<64x128xf32> to vector<1x64x128xf32>
    tpu.vector_store %arg6[%c0_24, %c0_25, %c0_26], %23 {strides = array<i32>} : memref<1x64x128xf32, #tpu.memory_space<vmem>>, vector<1x64x128xf32>,
    return
  }
  func.func @transform_0(%arg0: i32, %arg1: i32) -> (i32, i32, i32) {
    %c0_i32 = arith.constant 0 : i32
    %c0_i32_0 = arith.constant 0 : i32
    return %arg0, %c0_i32, %arg1 : i32, i32, i32
  }
  func.func @transform_1(%arg0: i32, %arg1: i32) -> (i32, i32, i32) {
    %c1_i32 = arith.constant 1 : i32
    %0 = arith.addi %arg1, %c1_i32 : i32
    %c1_i32_0 = arith.constant 1 : i32
    %1 = arith.muli %0, %c1_i32_0 : i32
    %c0_i32 = arith.constant 0 : i32
    %c0_i32_1 = arith.constant 0 : i32
    return %arg0, %c0_i32, %1 : i32, i32, i32
  }
  func.func @transform_2(%arg0: i32, %arg1: i32) -> (i32, i32) {
    %c0_i32 = arith.constant 0 : i32
    %c0_i32_0 = arith.constant 0 : i32
    %c0_i32_1 = arith.constant 0 : i32
    return %c0_i32, %c0_i32_0 : i32, i32
  }
  func.func @transform_3(%arg0: i32, %arg1: i32) -> (i32, i32) {
    %c0_i32 = arith.constant 0 : i32
    %c0_i32_0 = arith.constant 0 : i32
    %c0_i32_1 = arith.constant 0 : i32
    return %c0_i32, %c0_i32_0 : i32, i32
  }
  func.func @transform_4(%arg0: i32, %arg1: i32) -> (i32, i32, i32) {
    %c0_i32 = arith.constant 0 : i32
    %c0_i32_0 = arith.constant 0 : i32
    return %arg0, %c0_i32, %arg1 : i32, i32, i32
  }
}

</mosaic_0001>

<llo_original>
// kernel: tpu_custom_call.1
$region0: #{tpu_custom_call.1}
  #allocation0 [shape = 'u32[]', space=smem, size = 0x4, offset = 0x4, fixed_abs, tag = 'smem constant byte address 0x4 - core index']
  #allocation1 [shape = 'u32[144,128]{1,0:T(1,128)}', space=vmem, size = 0x12000, scoped, tag = 'internal scratch']
  #allocation2 [shape = 'f32[96,128]{1,0:T(8,128)}', space=vmem, size = 0xc000, scoped, tag = 'scratch operand']
  %s0 = inlined_call_operand.hbm [shape: f32[2,32,256], index: 0, kind: input, shape index: {}]
  %s1 = inlined_call_operand.hbm [shape: f32[2,32,256], index: 1, kind: input, shape index: {}]
  %s2 = inlined_call_operand.vmem [shape: f32[64,96], index: 2, kind: input, shape index: {}]
  %s3 = inlined_call_operand.vmem [shape: f32[64,1], index: 3, kind: input, shape index: {}]
  %s4 = inlined_call_operand.hbm [shape: f32[2,64,128], index: 4, kind: output, shape index: {}]
  %s5 = sld [smem:[#allocation0]]
  $region57: #{tpu_custom_call.1} parent=0
    _
  %s7 = ssub.s32 1, %s5
  %s8 = scalar_select 0, %s7, %s5
  $region1: #{tpu_custom_call.1} parent=0
    #allocation3 [shape = 'u8[32768]{0}', space=vmem, size = 0x8000, scoped, tag = 'input window, operand 0']
    #allocation4 [shape = 's32[2]{0}', space=sflag, size = 0x8, scoped, tag = 'scoped memory for tpu_custom_call.1']
    #allocation5 [shape = 's32[2]{0}', space=sflag, size = 0x8, scoped, tag = 'scoped memory for tpu_custom_call.1']
    #allocation6 [shape = 'u8[32768]{0}', space=vmem, size = 0x8000, scoped, tag = 'input window, operand 1']
    #allocation7 [shape = 's32[2]{0}', space=sflag, size = 0x8, scoped, tag = 'scoped memory for tpu_custom_call.1']
    #allocation8 [shape = 'u8[65536]{0}', space=vmem, size = 0x10000, scoped, tag = 'output window, operand 0']
    %9 = vsyncpa [#allocation4], 0
    %s10 = scalar_lea.sflag [#allocation4], 1
    %11 = vsyncpa %s10, 0
    %12 = vsyncpa [#allocation7], 0
    %s13 = scalar_lea.sflag [#allocation7], 1
    %14 = vsyncpa %s13, 0
    %15 = vsyncpa [#allocation5], 0
    %s16 = scalar_lea.sflag [#allocation5], 1
    %17 = vsyncpa %s16, 0
    loop: start=0, step=1, limit=4
    $region2: #{tpu_custom_call.1} parent=1 // loop_pre_header
      _
    $region3: #{tpu_custom_call.1} parent=1 // loop_header
      %s19 = sphi 0, %s23
      %p20 = scmp.ge.s32.totalorder %s19, 4
      %s26 = sphi 0, %s38
      %s27 = sphi 0, %s34
      %s28 = sphi 0, %s26
      %s29 = sphi 0, %s27
      %s30 = sphi 0, %s28
      %s31 = sphi 0, %s29
      %s43 = sphi 0, %s45
      %s46 = sphi 0, %s43
      %s47 = sphi 0, %s46
      %s63 = sphi 0, %s47
      %s73 = sphi 0, %s75
      %s76 = sphi 0, %s73
      %s77 = sphi 0, %s76
      %s93 = sphi 0, %s77
      %s97 = sphi 0, %s97
      %s99 = sphi 0, %s97
      %s100 = sphi 0, %s99
      %s114 = sphi 0, %s100
      %s118 = sphi 0, %s118
      %s120 = sphi 0, %s118
      %s121 = sphi 0, %s120
      %s135 = sphi 0, %s121
      %s143 = sphi 0, %s145
      %s146 = sphi 0, %s143
      %s147 = sphi 0, %s146
      %s163 = sphi 0, %s147
    $region4: #{tpu_custom_call.1} parent=1 // loop_header_branch
      %22 = sbr.rel (%p20) target = $region8
    $region5: #{tpu_custom_call.1} parent=1 // loop_body
      %s24 = ssub.s32 %s19, 1
      %s25 = ssub.s32 %s19, 2
      %s32 = sadd.s32 1, %s27
      %p33 = scmp.ge.s32.totalorder %s32, 1
      %s34 = scalar_select %p33, 0, %s32
      %s35 = sadd.s32 1, %s26
      %s36 = scalar_select %p33, %s35, %s26
      %p37 = scmp.ge.s32.totalorder %s36, 2
      %s38 = scalar_select %p37, 0, %s36
      %s39 = ssub.s32 %s26, %s38
      %s40 = ssub.s32 %s27, %s34
      %s41 = sor.u32 %s39, %s40
      %p42 = scmp.eq.s32.totalorder %s41, 0
      %s44 = sadd.s32 %s43, 1
      %s45 = scalar_select %p42, %s43, %s44
      %p48 = pneg %p42
      %p49 = scmp.eq.s32.totalorder %s19, 1
      %p50 = por %p48, %p49
      %p51 = scmp.ne.s32.totalorder %s43, %s46
      %p52 = scmp.eq.s32.totalorder %s19, 0
      %p53 = por %p51, %p52
      %p54 = scmp.ne.s32.totalorder %s43, %s46
      %p55 = scmp.eq.s32.totalorder %s24, 1
      %p56 = por %p54, %p55
      %p57 = scmp.ne.s32.totalorder %s46, %s47
      %p58 = scmp.eq.s32.totalorder %s24, 0
      %p59 = por %p57, %p58
      %p60 = scmp.ne.s32.totalorder %s46, %s47
      %p61 = scmp.eq.s32.totalorder %s25, 1
      %p62 = por %p60, %p61
      %p64 = scmp.ne.s32.totalorder %s47, %s63
      %p65 = scmp.eq.s32.totalorder %s25, 0
      %p66 = por %p64, %p65
      %s67 = sadd.s32 %s27, 1
      %s68 = sadd.s32 %s34, 1
      %s69 = ssub.s32 %s26, %s38
      %s70 = ssub.s32 %s67, %s68
      %s71 = sor.u32 %s69, %s70
      %p72 = scmp.eq.s32.totalorder %s71, 0
      %s74 = sadd.s32 %s73, 1
      %s75 = scalar_select %p72, %s73, %s74
      %p78 = pneg %p72
      %p79 = scmp.eq.s32.totalorder %s19, 1
      %p80 = por %p78, %p79
      %p81 = scmp.ne.s32.totalorder %s73, %s76
      %p82 = scmp.eq.s32.totalorder %s19, 0
      %p83 = por %p81, %p82
      %p84 = scmp.ne.s32.totalorder %s73, %s76
      %p85 = scmp.eq.s32.totalorder %s24, 1
      %p86 = por %p84, %p85
      %p87 = scmp.ne.s32.totalorder %s76, %s77
      %p88 = scmp.eq.s32.totalorder %s24, 0
      %p89 = por %p87, %p88
      %p90 = scmp.ne.s32.totalorder %s76, %s77
      %p91 = scmp.eq.s32.totalorder %s25, 1
      %p92 = por %p90, %p91
      %p94 = scmp.ne.s32.totalorder %s77, %s93
      %p95 = scmp.eq.s32.totalorder %s25, 0
      %p96 = por %p94, %p95
      %s98 = sadd.s32 %s97, 1
      %p101 = scmp.eq.s32.totalorder %s19, 1
      %p102 = scmp.ne.s32.totalorder %s97, %s99
      %p103 = scmp.eq.s32.totalorder %s19, 0
      %p104 = por %p102, %p103
      %p105 = scmp.ne.s32.totalorder %s97, %s99
      %p106 = scmp.eq.s32.totalorder %s24, 1
      %p107 = por %p105, %p106
      %p108 = scmp.ne.s32.totalorder %s99, %s100
      %p109 = scmp.eq.s32.totalorder %s24, 0
      %p110 = por %p108, %p109
      %p111 = scmp.ne.s32.totalorder %s99, %s100
      %p112 = scmp.eq.s32.totalorder %s25, 1
      %p113 = por %p111, %p112
      %p115 = scmp.ne.s32.totalorder %s100, %s114
      %p116 = scmp.eq.s32.totalorder %s25, 0
      %p117 = por %p115, %p116
      %s119 = sadd.s32 %s118, 1
      %p122 = scmp.eq.s32.totalorder %s19, 1
      %p123 = scmp.ne.s32.totalorder %s118, %s120
      %p124 = scmp.eq.s32.totalorder %s19, 0
      %p125 = por %p123, %p124
      %p126 = scmp.ne.s32.totalorder %s118, %s120
      %p127 = scmp.eq.s32.totalorder %s24, 1
      %p128 = por %p126, %p127
      %p129 = scmp.ne.s32.totalorder %s120, %s121
      %p130 = scmp.eq.s32.totalorder %s24, 0
      %p131 = por %p129, %p130
      %p132 = scmp.ne.s32.totalorder %s120, %s121
      %p133 = scmp.eq.s32.totalorder %s25, 1
      %p134 = por %p132, %p133
      %p136 = scmp.ne.s32.totalorder %s121, %s135
      %p137 = scmp.eq.s32.totalorder %s25, 0
      %p138 = por %p136, %p137
      %s139 = ssub.s32 %s26, %s38
      %s140 = ssub.s32 %s27, %s34
      %s141 = sor.u32 %s139, %s140
      %p142 = scmp.eq.s32.totalorder %s141, 0
      %s144 = sadd.s32 %s143, 1
      %s145 = scalar_select %p142, %s143, %s144
      %p148 = pneg %p142
      %p149 = scmp.eq.s32.totalorder %s19, 1
      %p150 = por %p148, %p149
      %p151 = scmp.ne.s32.totalorder %s143, %s146
      %p152 = scmp.eq.s32.totalorder %s19, 0
      %p153 = por %p151, %p152
      %p154 = scmp.ne.s32.totalorder %s143, %s146
      %p155 = scmp.eq.s32.totalorder %s24, 1
      %p156 = por %p154, %p155
      %p157 = scmp.ne.s32.totalorder %s146, %s147
      %p158 = scmp.eq.s32.totalorder %s24, 0
      %p159 = por %p157, %p158
      %p160 = scmp.ne.s32.totalorder %s146, %s147
      %p161 = scmp.eq.s32.totalorder %s25, 1
      %p162 = por %p160, %p161
      %p164 = scmp.ne.s32.totalorder %s147, %s163
      %p165 = scmp.eq.s32.totalorder %s25, 0
      %p166 = por %p164, %p165
      %p167 = scmp.le.s32.totalorder 1, %s19
      %p168 = scmp.lt.s32.totalorder %s19, 3
      %p169 = pnand %p167, %p168
      %p170 = pneg %p169
      // Predicated region
      $region9: #{tpu_custom_call.1} parent=5 // pred_check
        _
      $region10: #{tpu_custom_call.1} parent=5 // pred_check_branch
        %172 = sbr.rel (%p169) target = $region12
      $region11: #{tpu_custom_call.1} parent=5 // pred_region
        %s173 = ssub.s32 %s19, 1
        // Predicated region
        $region13: #{tpu_custom_call.1} parent=11 // pred_check
          %p174 = pneg %p110
        $region14: #{tpu_custom_call.1} parent=11 // pred_check_branch
          %176 = sbr.rel (%p174) target = $region16
        $region15: #{tpu_custom_call.1} parent=11 // pred_region
          _
        $region16: #{tpu_custom_call.1} parent=11 // pred_fallthru
          _
        // Predicated region
        $region17: #{tpu_custom_call.1} parent=11 // pred_check
          %p177 = pneg %p131
        $region18: #{tpu_custom_call.1} parent=11 // pred_check_branch
          %179 = sbr.rel (%p177) target = $region20
        $region19: #{tpu_custom_call.1} parent=11 // pred_region
          _
        $region20: #{tpu_custom_call.1} parent=11 // pred_fallthru
          _
      $region12: #{tpu_custom_call.1} parent=5 // pred_fallthru
        _
      %p180 = scmp.lt.s32.totalorder %s19, 2
      // Predicated region
      $region21: #{tpu_custom_call.1} parent=5 // pred_check
        %p181 = pneg %p180
      $region22: #{tpu_custom_call.1} parent=5 // pred_check_branch
        %183 = sbr.rel (%p181) target = $region24
      $region23: #{tpu_custom_call.1} parent=5 // pred_region
        // Predicated region
        $region25: #{tpu_custom_call.1} parent=23 // pred_check
          %p184 = pneg %p53
        $region26: #{tpu_custom_call.1} parent=23 // pred_check_branch
          %186 = sbr.rel (%p184) target = $region28
        $region27: #{tpu_custom_call.1} parent=23 // pred_region
          %s187 = sand.u32 %s43, 1
          %s188 = scalar_lea.sflag [#allocation4], %s187
          %s189 = sand.u32 %s43, 1
          %s190 = smul.addr %s189, 32
          %s191 = scalar_lea.vmem [#allocation3], %s190
          %s193 = ssub.s32 512, 512
          %194 = vsyncadd %s188, %s193
          %s195 = smul.addr %s26, 8
          %s196 = sadd.s32 %s27, %s195
          %s197 = smul.addr %s196, 128
          %s198 = scalar_lea.hbm %s0, %s197
          %s199 = sshll.u32 %s191, 4
          %s200 = int_to_ptr.vmem [resolvable:$true] %s199
          %205 = dma.hbm_to_vmem [thread:$0]  %s198, 512, %s200, %s188, 256, 128, 8
        $region28: #{tpu_custom_call.1} parent=23 // pred_fallthru
          _
        // Predicated region
        $region29: #{tpu_custom_call.1} parent=23 // pred_check
          %p206 = pneg %p83
        $region30: #{tpu_custom_call.1} parent=23 // pred_check_branch
          %208 = sbr.rel (%p206) target = $region32
        $region31: #{tpu_custom_call.1} parent=23 // pred_region
          %s209 = sand.u32 %s73, 1
          %s210 = scalar_lea.sflag [#allocation7], %s209
          %s211 = sand.u32 %s73, 1
          %s212 = smul.addr %s211, 32
          %s213 = scalar_lea.vmem [#allocation6], %s212
          %s214 = sadd.s32 %s27, 1
          %s216 = ssub.s32 512, 512
          %217 = vsyncadd %s210, %s216
          %s218 = smul.addr %s26, 8
          %s219 = sadd.s32 %s214, %s218
          %s220 = smul.addr %s219, 128
          %s221 = scalar_lea.hbm %s1, %s220
          %s222 = sshll.u32 %s213, 4
          %s223 = int_to_ptr.vmem [resolvable:$true] %s222
          %228 = dma.hbm_to_vmem [thread:$0]  %s221, 512, %s223, %s210, 256, 128, 8
        $region32: #{tpu_custom_call.1} parent=23 // pred_fallthru
          _
      $region24: #{tpu_custom_call.1} parent=5 // pred_fallthru
        _
      %p229 = scmp.le.s32.totalorder 1, %s19
      %p230 = scmp.lt.s32.totalorder %s19, 3
      %p231 = pnand %p229, %p230
      %p232 = pneg %p231
      // Predicated region
      $region33: #{tpu_custom_call.1} parent=5 // pred_check
        _
      $region34: #{tpu_custom_call.1} parent=5 // pred_check_branch
        %234 = sbr.rel (%p231) target = $region36
      $region35: #{tpu_custom_call.1} parent=5 // pred_region
        %s235 = ssub.s32 %s19, 1
        %s236 = sand.u32 %s46, 1
        %s237 = scalar_lea.sflag [#allocation4], %s236
        %s238 = sand.u32 %s46, 1
        %s239 = smul.addr %s238, 32
        %s240 = scalar_lea.vmem [#allocation3], %s239
        // Predicated region
        $region37: #{tpu_custom_call.1} parent=35 // pred_check
          %p241 = pneg %p59
        $region38: #{tpu_custom_call.1} parent=35 // pred_check_branch
          %243 = sbr.rel (%p241) target = $region40
        $region39: #{tpu_custom_call.1} parent=35 // pred_region
          %244 = dma.done %s237, 512
        $region40: #{tpu_custom_call.1} parent=35 // pred_fallthru
          _
        %s245 = sand.u32 %s76, 1
        %s246 = scalar_lea.sflag [#allocation7], %s245
        %s247 = sand.u32 %s76, 1
        %s248 = smul.addr %s247, 32
        %s249 = scalar_lea.vmem [#allocation6], %s248
        // Predicated region
        $region41: #{tpu_custom_call.1} parent=35 // pred_check
          %p250 = pneg %p89
        $region42: #{tpu_custom_call.1} parent=35 // pred_check_branch
          %252 = sbr.rel (%p250) target = $region44
        $region43: #{tpu_custom_call.1} parent=35 // pred_region
          %253 = dma.done %s246, 512
        $region44: #{tpu_custom_call.1} parent=35 // pred_fallthru
          _
        %s254 = sand.u32 %s46, 1
        %s255 = scalar_lea.sflag [#allocation4], %s254
        %s256 = sand.u32 %s46, 1
        %s257 = smul.addr %s256, 32
        %s258 = scalar_lea.vmem [#allocation3], %s257
        %p259 = pneg %p59
        %p260 = pneg %p56
        %s261 = sand.u32 %s76, 1
        %s262 = scalar_lea.sflag [#allocation7], %s261
        %s263 = sand.u32 %s76, 1
        %s264 = smul.addr %s263, 32
        %s265 = scalar_lea.vmem [#allocation6], %s264
        %p266 = pneg %p89
        %p267 = pneg %p86
        %p268 = pneg %p110
        %p269 = pneg %p107
        %p270 = pneg %p131
        %p271 = pneg %p128
        %p272 = pneg %p159
        %p273 = pneg %p156
        %s274 = sand.u32 %s146, 1
        %s275 = scalar_lea.sflag [#allocation5], %s274
        %s276 = sand.u32 %s146, 1
        %s277 = smul.addr %s276, 64
        %s278 = scalar_lea.vmem [#allocation8], %s277
        %s279 = sadd.s32 %s29, 1
        %v280 = vld [vmem:[%s240] sm:$0xff]
        %v281 = vld [vmem:[%s240 + $0x8] sm:$0xff]
        %v282 = vld [vmem:[%s240 + $0x10] sm:$0xff]
        %v283 = vld [vmem:[%s240 + $0x18] sm:$0xff]
        %284 = vst [vmem:[#allocation2] sm:$0xff] %v280
        %285 = vst [vmem:[#allocation2 + $0x8] sm:$0xff] %v281
        %286 = vst [vmem:[#allocation2 + $0x10] sm:$0xff] %v282
        %287 = vst [vmem:[#allocation2 + $0x18] sm:$0xff] %v283
        %v288 = vld [vmem:[%s240] sm:$0xff]
        %v289 = vld [vmem:[%s240 + $0x8] sm:$0xff]
        %v290 = vld [vmem:[%s240 + $0x10] sm:$0xff]
        %v291 = vld [vmem:[%s240 + $0x18] sm:$0xff]
        %296 = vrot.lane.b32.xlu0 %v288, 126
        %v297 = vpop.permute.xlu0 %296
        %298 = vrot.lane.b32.xlu0 %v289, 126
        %v299 = vpop.permute.xlu0 %298
        %300 = vrot.lane.b32.xlu0 %v290, 126
        %v301 = vpop.permute.xlu0 %300
        %302 = vrot.lane.b32.xlu0 %v291, 126
        %v303 = vpop.permute.xlu0 %302
        %vm308 = vcmask 1031168
        %309 = vst.msk [vmem:[#allocation2 + $0x20] sm:$0xff] %vm308, %v297
        %310 = vst.msk [vmem:[#allocation2 + $0x28] sm:$0xff] %vm308, %v299
        %311 = vst.msk [vmem:[#allocation2 + $0x30] sm:$0xff] %vm308, %v301
        %312 = vst.msk [vmem:[#allocation2 + $0x38] sm:$0xff] %vm308, %v303
        %v313 = vld [vmem:[%s249] sm:$0xff]
        %v314 = vld [vmem:[%s249 + $0x8] sm:$0xff]
        %v315 = vld [vmem:[%s249 + $0x10] sm:$0xff]
        %v316 = vld [vmem:[%s249 + $0x18] sm:$0xff]
        %321 = vrot.lane.b32.xlu0 %v313, 126
        %v322 = vpop.permute.xlu0 %321
        %323 = vrot.lane.b32.xlu0 %v314, 126
        %v324 = vpop.permute.xlu0 %323
        %325 = vrot.lane.b32.xlu0 %v315, 126
        %v326 = vpop.permute.xlu0 %325
        %327 = vrot.lane.b32.xlu0 %v316, 126
        %v328 = vpop.permute.xlu0 %327
        %vm333 = vcmask 1048560
        %334 = vst.msk [vmem:[#allocation2 + $0x20] sm:$0xff] %vm333, %v322
        %335 = vst.msk [vmem:[#allocation2 + $0x28] sm:$0xff] %vm333, %v324
        %336 = vst.msk [vmem:[#allocation2 + $0x30] sm:$0xff] %vm333, %v326
        %337 = vst.msk [vmem:[#allocation2 + $0x38] sm:$0xff] %vm333, %v328
        %v338 = vld [vmem:[%s240] sm:$0xff]
        %v339 = vld [vmem:[%s240 + $0x8] sm:$0xff]
        %v340 = vld [vmem:[%s240 + $0x10] sm:$0xff]
        %v341 = vld [vmem:[%s240 + $0x18] sm:$0xff]
        %346 = vrot.lane.b32.xlu0 %v338, 124
        %v347 = vpop.permute.xlu0 %346
        %348 = vrot.lane.b32.xlu0 %v339, 124
        %v349 = vpop.permute.xlu0 %348
        %350 = vrot.lane.b32.xlu0 %v340, 124
        %v351 = vpop.permute.xlu0 %350
        %352 = vrot.lane.b32.xlu0 %v341, 124
        %v353 = vpop.permute.xlu0 %352
        %vm358 = vcmask 1014784
        %359 = vst.msk [vmem:[#allocation2 + $0x40] sm:$0xff] %vm358, %v347
        %360 = vst.msk [vmem:[#allocation2 + $0x48] sm:$0xff] %vm358, %v349
        %361 = vst.msk [vmem:[#allocation2 + $0x50] sm:$0xff] %vm358, %v351
        %362 = vst.msk [vmem:[#allocation2 + $0x58] sm:$0xff] %vm358, %v353
        %v363 = vld [vmem:[%s249] sm:$0xff]
        %v364 = vld [vmem:[%s249 + $0x8] sm:$0xff]
        %v365 = vld [vmem:[%s249 + $0x10] sm:$0xff]
        %v366 = vld [vmem:[%s249 + $0x18] sm:$0xff]
        %371 = vrot.lane.b32.xlu0 %v363, 124
        %v372 = vpop.permute.xlu0 %371
        %373 = vrot.lane.b32.xlu0 %v364, 124
        %v374 = vpop.permute.xlu0 %373
        %375 = vrot.lane.b32.xlu0 %v365, 124
        %v376 = vpop.permute.xlu0 %375
        %377 = vrot.lane.b32.xlu0 %v366, 124
        %v378 = vpop.permute.xlu0 %377
        %vm383 = vcmask 1048544
        %384 = vst.msk [vmem:[#allocation2 + $0x40] sm:$0xff] %vm383, %v372
        %385 = vst.msk [vmem:[#allocation2 + $0x48] sm:$0xff] %vm383, %v374
        %386 = vst.msk [vmem:[#allocation2 + $0x50] sm:$0xff] %vm383, %v376
        %387 = vst.msk [vmem:[#allocation2 + $0x58] sm:$0xff] %vm383, %v378
        %v388 = vld [vmem:[%s2] sm:$0xff]
        %v389 = vld [vmem:[%s2 + $0x8] sm:$0xff]
        %v390 = vld [vmem:[%s2 + $0x10] sm:$0xff]
        %v391 = vld [vmem:[%s2 + $0x18] sm:$0xff]
        %v392 = vld [vmem:[%s2 + $0x20] sm:$0xff]
        %v393 = vld [vmem:[%s2 + $0x28] sm:$0xff]
        %v394 = vld [vmem:[%s2 + $0x30] sm:$0xff]
        %v395 = vld [vmem:[%s2 + $0x38] sm:$0xff]
        %v396 = vld [vmem:[#allocation2] sm:$0xff]
        %v397 = vld [vmem:[#allocation2 + $0x8] sm:$0xff]
        %v398 = vld [vmem:[#allocation2 + $0x10] sm:$0xff]
        %v399 = vld [vmem:[#allocation2 + $0x18] sm:$0xff]
        %v400 = vld [vmem:[#allocation2 + $0x20] sm:$0xff]
        %v401 = vld [vmem:[#allocation2 + $0x28] sm:$0xff]
        %v402 = vld [vmem:[#allocation2 + $0x30] sm:$0xff]
        %v403 = vld [vmem:[#allocation2 + $0x38] sm:$0xff]
        %v404 = vld [vmem:[#allocation2 + $0x40] sm:$0xff]
        %v405 = vld [vmem:[#allocation2 + $0x48] sm:$0xff]
        %v406 = vld [vmem:[#allocation2 + $0x50] sm:$0xff]
        %v407 = vld [vmem:[#allocation2 + $0x58] sm:$0xff]
        %v408 = vld [vmem:[%s3] sm:$0xff]
        %v409 = vld [vmem:[%s3 + $0x8] sm:$0xff]
        %v410 = vld [vmem:[%s3 + $0x10] sm:$0xff]
        %v411 = vld [vmem:[%s3 + $0x18] sm:$0xff]
        %v412 = vld [vmem:[%s3 + $0x20] sm:$0xff]
        %v413 = vld [vmem:[%s3 + $0x28] sm:$0xff]
        %v414 = vld [vmem:[%s3 + $0x30] sm:$0xff]
        %v415 = vld [vmem:[%s3 + $0x38] sm:$0xff]
        %417 = vset.pattern.permute.xlu0 0
        %418 = vperm.xlu0 %417, %v408
        %v419 = vpop.permute.xlu0 %418
        %422 = vset.pattern.permute.xlu0 0
        %423 = vperm.xlu0 %422, %v409
        %v424 = vpop.permute.xlu0 %423
        %427 = vset.pattern.permute.xlu0 0
        %428 = vperm.xlu0 %427, %v410
        %v429 = vpop.permute.xlu0 %428
        %432 = vset.pattern.permute.xlu0 0
        %433 = vperm.xlu0 %432, %v411
        %v434 = vpop.permute.xlu0 %433
        %437 = vset.pattern.permute.xlu0 0
        %438 = vperm.xlu0 %437, %v412
        %v439 = vpop.permute.xlu0 %438
        %442 = vset.pattern.permute.xlu0 0
        %443 = vperm.xlu0 %442, %v413
        %v444 = vpop.permute.xlu0 %443
        %447 = vset.pattern.permute.xlu0 0
        %448 = vperm.xlu0 %447, %v414
        %v449 = vpop.permute.xlu0 %448
        %452 = vset.pattern.permute.xlu0 0
        %453 = vperm.xlu0 %452, %v415
        %v454 = vpop.permute.xlu0 %453
        %vm456 = vcmask 785408
        %v458 = vsel %vm456, %v388, 0
        %v461 = vsel %vm456, %v389, 0
        %v464 = vsel %vm456, %v390, 0
        %v467 = vsel %vm456, %v391, 0
        %v470 = vsel %vm456, %v392, 0
        %v473 = vsel %vm456, %v393, 0
        %v476 = vsel %vm456, %v394, 0
        %v479 = vsel %vm456, %v395, 0
        %481 = vmatprep.subr.mxu0 0.0
        %482 = vmatpush1.msra.mxu0 0.0
        %483 = vmatprep.subr.mxu0 0.0
        %484 = vmatpush1.msra.mxu0 0.0
        %485 = vmatprep.subr.mxu0 0.0
        %486 = vmatpush1.msra.mxu0 0.0
        %487 = vmatprep.subr.mxu0 0.0
        %488 = vmatpush1.msra.mxu0 0.0
        %489 = vmatprep.subr.mxu0 0.0
        %490 = vmatpush1.msra.mxu0 %v407
        %491 = vmatprep.subr.mxu0 0.0
        %492 = vmatpush1.msra.mxu0 %v406
        %493 = vmatprep.subr.mxu0 0.0
        %494 = vmatpush1.msra.mxu0 %v405
        %495 = vmatprep.subr.mxu0 0.0
        %496 = vmatpush1.msra.mxu0 %v404
        %497 = vmatprep.subr.mxu0 0.0
        %498 = vmatpush1.msra.mxu0 %v403
        %499 = vmatprep.subr.mxu0 0.0
        %500 = vmatpush1.msra.mxu0 %v402
        %501 = vmatprep.subr.mxu0 0.0
        %502 = vmatpush1.msra.mxu0 %v401
        %503 = vmatprep.subr.mxu0 0.0
        %504 = vmatpush1.msra.mxu0 %v400
        %505 = vmatprep.subr.mxu0 0.0
        %506 = vmatpush1.msra.mxu0 %v399
        %507 = vmatprep.subr.mxu0 0.0
        %508 = vmatpush1.msra.mxu0 %v398
        %509 = vmatprep.subr.mxu0 0.0
        %510 = vmatpush1.msra.mxu0 %v397
        %511 = vmatprep.subr.mxu0 0.0
        %512 = vmatpush1.msra.mxu0 %v396
        %513 = vmatprep.subr.mxu0 0.0
        %514 = vmatpush2.msra.mxu0 0.0
        %515 = vmatprep.subr.mxu0 0.0
        %516 = vmatpush2.msra.mxu0 0.0
        %517 = vmatprep.subr.mxu0 0.0
        %518 = vmatpush2.msra.mxu0 0.0
        %519 = vmatprep.subr.mxu0 0.0
        %520 = vmatpush2.msra.mxu0 0.0
        %521 = vmatprep.subr.mxu0 0.0
        %522 = vmatpush2.msra.mxu0 0.0
        %523 = vmatprep.subr.mxu0 0.0
        %524 = vmatpush2.msra.mxu0 0.0
        %525 = vmatprep.subr.mxu0 0.0
        %526 = vmatpush2.msra.mxu0 0.0
        %527 = vmatprep.subr.mxu0 0.0
        %528 = vmatpush2.msra.mxu0 0.0
        %529 = vmatprep.subr.mxu0 0.0
        %530 = vmatpush2.msra.mxu0 0.0
        %531 = vmatprep.subr.mxu0 0.0
        %532 = vmatpush2.msra.mxu0 0.0
        %533 = vmatprep.subr.mxu0 0.0
        %534 = vmatpush2.msra.mxu0 0.0
        %535 = vmatprep.subr.mxu0 0.0
        %536 = vmatpush2.msra.mxu0 0.0
        %537 = vmatprep.subr.mxu0 0.0
        %538 = vmatpush2.msra.mxu0 0.0
        %539 = vmatprep.subr.mxu0 0.0
        %540 = vmatpush2.msra.mxu0 0.0
        %541 = vmatprep.subr.mxu0 0.0
        %542 = vmatpush2.msra.mxu0 0.0
        %543 = vmatprep.subr.mxu0 0.0
        %544 = vmatpush2.msra.mxu0 0.0
        %545 = vmatprep.mubr.f32.mxu0 0.0
        %546 = vmatmul.mubr.f32.gmra.mxu0 %v458
        %v547 = vpop.f32.mrf.mxu0
        %v548 = vadd.f32 %v419, %v547
        %v549 = vpop.f32.mrf.mxu0
        %550 = vmatprep.mubr.f32.mxu0 0.0
        %551 = vmatmul.mubr.f32.gmra.mxu0 %v461
        %v552 = vpop.f32.mrf.mxu0
        %v553 = vadd.f32 %v424, %v552
        %v554 = vpop.f32.mrf.mxu0
        %555 = vmatprep.mubr.f32.mxu0 0.0
        %556 = vmatmul.mubr.f32.gmra.mxu0 %v464
        %v557 = vpop.f32.mrf.mxu0
        %v558 = vadd.f32 %v429, %v557
        %v559 = vpop.f32.mrf.mxu0
        %560 = vmatprep.mubr.f32.mxu0 0.0
        %561 = vmatmul.mubr.f32.gmra.mxu0 %v467
        %v562 = vpop.f32.mrf.mxu0
        %v563 = vadd.f32 %v434, %v562
        %v564 = vpop.f32.mrf.mxu0
        %565 = vmatprep.mubr.f32.mxu0 0.0
        %566 = vmatmul.mubr.f32.gmra.mxu0 %v470
        %v567 = vpop.f32.mrf.mxu0
        %v568 = vadd.f32 %v439, %v567
        %v569 = vpop.f32.mrf.mxu0
        %570 = vmatprep.mubr.f32.mxu0 0.0
        %571 = vmatmul.mubr.f32.gmra.mxu0 %v473
        %v572 = vpop.f32.mrf.mxu0
        %v573 = vadd.f32 %v444, %v572
        %v574 = vpop.f32.mrf.mxu0
        %575 = vmatprep.mubr.f32.mxu0 0.0
        %576 = vmatmul.mubr.f32.gmra.mxu0 %v476
        %v577 = vpop.f32.mrf.mxu0
        %v578 = vadd.f32 %v449, %v577
        %v579 = vpop.f32.mrf.mxu0
        %580 = vmatprep.mubr.f32.mxu0 0.0
        %581 = vmatmul.mubr.f32.gmra.mxu0 %v479
        %v582 = vpop.f32.mrf.mxu0
        %v583 = vadd.f32 %v454, %v582
        %v584 = vpop.f32.mrf.mxu0
        %585 = vdwg.mxu0
        %586 = vst [vmem:[%s278] sm:$0xff] %v548
        %587 = vst [vmem:[%s278 + $0x8] sm:$0xff] %v553
        %588 = vst [vmem:[%s278 + $0x10] sm:$0xff] %v558
        %589 = vst [vmem:[%s278 + $0x18] sm:$0xff] %v563
        %590 = vst [vmem:[%s278 + $0x20] sm:$0xff] %v568
        %591 = vst [vmem:[%s278 + $0x28] sm:$0xff] %v573
        %592 = vst [vmem:[%s278 + $0x30] sm:$0xff] %v578
        %593 = vst [vmem:[%s278 + $0x38] sm:$0xff] %v583
        %s594 = sand.u32 %s146, 1
        %s595 = scalar_lea.sflag [#allocation5], %s594
        %s596 = sand.u32 %s146, 1
        %s597 = smul.addr %s596, 64
        %s598 = scalar_lea.vmem [#allocation8], %s597
        // Predicated region
        $region45: #{tpu_custom_call.1} parent=35 // pred_check
          %p599 = pneg %p156
        $region46: #{tpu_custom_call.1} parent=35 // pred_check_branch
          %601 = sbr.rel (%p599) target = $region48
        $region47: #{tpu_custom_call.1} parent=35 // pred_region
          %s603 = ssub.s32 1024, 1024
          %604 = vsyncadd %s595, %s603
          %s605 = smul.addr %s28, 8
          %s606 = sadd.s32 %s29, %s605
          %s607 = smul.addr %s606, 128
          %s608 = scalar_lea.hbm %s4, %s607
          %s609 = sshll.u32 %s598, 4
          %s610 = int_to_ptr.vmem [resolvable:$true] %s609
          %615 = dma.vmem_to_hbm [thread:$0]  %s610, 1024, %s608, %s595, 128, 128, 8
        $region48: #{tpu_custom_call.1} parent=35 // pred_fallthru
          _
      $region36: #{tpu_custom_call.1} parent=5 // pred_fallthru
        _
      %p616 = scmp.le.s32.totalorder 2, %s19
      // Predicated region
      $region49: #{tpu_custom_call.1} parent=5 // pred_check
        %p617 = pneg %p616
      $region50: #{tpu_custom_call.1} parent=5 // pred_check_branch
        %619 = sbr.rel (%p617) target = $region52
      $region51: #{tpu_custom_call.1} parent=5 // pred_region
        %s620 = ssub.s32 %s19, 2
        // Predicated region
        $region53: #{tpu_custom_call.1} parent=51 // pred_check
          %p621 = pneg %p162
        $region54: #{tpu_custom_call.1} parent=51 // pred_check_branch
          %623 = sbr.rel (%p621) target = $region56
        $region55: #{tpu_custom_call.1} parent=51 // pred_region
          %s624 = sand.u32 %s147, 1
          %s625 = scalar_lea.sflag [#allocation5], %s624
          %s626 = sand.u32 %s147, 1
          %s627 = smul.addr %s626, 64
          %s628 = scalar_lea.vmem [#allocation8], %s627
          %629 = dma.done %s625, 1024
        $region56: #{tpu_custom_call.1} parent=51 // pred_fallthru
          _
      $region52: #{tpu_custom_call.1} parent=5 // pred_fallthru
        _
    $region6: #{tpu_custom_call.1} parent=1 // loop_footer
      %s23 = sadd.s32 1, %s19
    $region7: #{tpu_custom_call.1} parent=1 // loop_footer_branch
      %18 = sbr.rel target = $region3
    $region8: #{tpu_custom_call.1} parent=1 // loop_exit
      _
    %630 = vsyncpa [#allocation4], 1
    %s631 = scalar_lea.sflag [#allocation4], 1
    %632 = vsyncpa %s631, 1
    %633 = vsyncpa [#allocation7], 1
    %s634 = scalar_lea.sflag [#allocation7], 1
    %635 = vsyncpa %s634, 1
    %636 = vsyncpa [#allocation5], 1
    %s637 = scalar_lea.sflag [#allocation5], 1
    %638 = vsyncpa %s637, 1

</llo_original>
